<compile_context>
chip_gen: v5e
topology: v5e:2x2
jax: 0.10.0
libtpu: 0.0.40
codegen_flags: <defaults>
</compile_context>

<pallas_src>
import jax
import jax.numpy as jnp
from jax.experimental import pallas as pl
from jax.experimental.pallas import tpu as pltpu

BN_EPS = 1e-5
NEG_BIG = -1e30          # finite "-inf" for padded logit lanes (exp underflows to 0)
LANE = 128


def _round_up(n, m):
    return (n + m - 1) // m * m


def discriminator_kernel(x_ref, w1_ref, w2_ref, w3_ref, vec_ref, out_ref):
    # vec_ref rows: 0=gamma1, 1=beta1, 2=gamma2, 3=beta2, 4=b3 (+NEG_BIG pad)
    h2_w = w2_ref.shape[1]    # padded layer-2 width (128)
    out_w = w3_ref.shape[1]   # padded logits width (128)

    def bn_relu(h, g, be):
        # Fused batch-norm stats: one read of h yields mean and E[h^2];
        # var = E[h^2] - mu^2 (clamped at 0).  gamma/rsqrt/beta folded into a
        # single scale/shift pass.  Pre-BN linear bias is omitted upstream
        # because centering cancels it exactly.
        mu = jnp.mean(h, axis=0, keepdims=True)
        ex2 = jnp.mean(h * h, axis=0, keepdims=True)
        var = jnp.maximum(ex2 - mu * mu, 0.0)
        scale = g * jax.lax.rsqrt(var + BN_EPS)
        shift = be - mu * scale
        return jnp.maximum(h * scale + shift, 0.0)

    x = x_ref[...]                                            # (B, Dp) f32

    # fd1: Linear (bias folded away by BN) -> BatchNorm1d -> ReLU
    h = jnp.dot(x, w1_ref[...].astype(jnp.float32),
                preferred_element_type=jnp.float32)           # (B, H1p)
    h = bn_relu(h, vec_ref[0:1, :], vec_ref[1:2, :])

    # fd2: Linear (bias folded away by BN) -> BatchNorm1d -> ReLU
    h2 = jnp.dot(h, w2_ref[...].astype(jnp.float32),
                 preferred_element_type=jnp.float32)          # (B, 128)
    h2 = bn_relu(h2, vec_ref[2:3, :h2_w], vec_ref[3:4, :h2_w])

    # fd3: Linear -> LogSoftmax on a lane-dense (B, 128) tile.
    # Padded lanes carry zero weights + NEG_BIG bias, so they never win the max
    # and contribute exactly 0 to the sum-exp.
    logits = (jnp.dot(h2, w3_ref[...], preferred_element_type=jnp.float32)
              + vec_ref[4:5, :out_w])
    m = jnp.max(logits, axis=1, keepdims=True)
    lse = m + jnp.log(jnp.sum(jnp.exp(logits - m), axis=1, keepdims=True))
    out_ref[...] = logits - lse


def pack_params(params, input_dim, hidden_dim):
    """Lane-pad to multiples of 128, drop pre-BN biases, quantize the two big
    weight matrices to bf16, and pack all 1-row vectors into one tensor."""
    (w1, b1, g1, be1, w2, b2, g2, be2, w3, b3) = params
    del b1, b2  # mathematically dead: BatchNorm centering cancels them exactly

    Dp = _round_up(input_dim, LANE)
    H1p = _round_up(hidden_dim, LANE)
    H2p = _round_up(100, LANE)   # 128
    Op = _round_up(2, LANE)      # 128

    w1p = (jnp.zeros((Dp, H1p), jnp.float32)
           .at[:input_dim, :hidden_dim].set(w1).astype(jnp.bfloat16))
    w2p = (jnp.zeros((H1p, H2p), jnp.float32)
           .at[:hidden_dim, :100].set(w2).astype(jnp.bfloat16))
    w3p = jnp.zeros((H2p, Op), jnp.float32).at[:100, :2].set(w3)

    vec = jnp.zeros((8, H1p), jnp.float32)
    vec = vec.at[0, :hidden_dim].set(g1.reshape(-1))   # gamma1
    vec = vec.at[1, :hidden_dim].set(be1.reshape(-1))  # beta1
    vec = vec.at[2, :100].set(g2.reshape(-1))          # gamma2 (padded cols -> 0)
    vec = vec.at[3, :100].set(be2.reshape(-1))         # beta2
    vec = vec.at[4, :Op].set(NEG_BIG)                  # padded-logit "mask"
    vec = vec.at[4, :2].set(b3.reshape(-1))            # b3
    return w1p, w2p, w3p, vec


def discriminator_forward(x_nchw, packed):
    w1p, w2p, w3p, vec = packed
    B = x_nchw.shape[0]
    x = x_nchw.reshape(B, -1).astype(jnp.float32)      # torch: x.view(B, -1)
    Dp = w1p.shape[0]
    if x.shape[1] < Dp:                                # zero-pad feature lanes
        x = jnp.pad(x, ((0, 0), (0, Dp - x.shape[1])))
    Op = w3p.shape[1]

    vmem = pl.BlockSpec(memory_space=pltpu.MemorySpace.VMEM)
    out_padded = pl.pallas_call(
        discriminator_kernel,
        out_shape=jax.ShapeDtypeStruct((B, Op), jnp.float32),
        in_specs=[vmem] * 5,
        out_specs=vmem,
    )(x, w1p, w2p, w3p, vec)
    return out_padded[:, :2]


def init_params(key, input_dim, hidden_dim):
    """PyTorch-style Linear init (U(-1/sqrt(fan_in), 1/sqrt(fan_in)));
    BatchNorm gamma=1, beta=0.  Weights stored as (in, out)."""
    ks = jax.random.split(key, 6)

    def linear(kw, kb, fan_in, fan_out):
        bound = 1.0 / (fan_in ** 0.5)
        w = jax.random.uniform(kw, (fan_in, fan_out), jnp.float32, -bound, bound)
        b = jax.random.uniform(kb, (1, fan_out), jnp.float32, -bound, bound)
        return w, b

    w1, b1 = linear(ks[0], ks[1], input_dim, hidden_dim)
    g1 = jnp.ones((1, hidden_dim), jnp.float32)
    be1 = jnp.zeros((1, hidden_dim), jnp.float32)

    w2, b2 = linear(ks[2], ks[3], hidden_dim, 100)
    g2 = jnp.ones((1, 100), jnp.float32)
    be2 = jnp.zeros((1, 100), jnp.float32)

    w3, b3 = linear(ks[4], ks[5], 100, 2)
    return (w1, b1, g1, be1, w2, b2, g2, be2, w3, b3)


def reference_forward(x_nchw, params):
    """Pure-JAX reference: full module math (including the pre-BN biases the
    kernel drops), using the same bf16-stored values for w1/w2 as the kernel."""
    (w1, b1, g1, be1, w2, b2, g2, be2, w3, b3) = params
    w1q = w1.astype(jnp.bfloat16).astype(jnp.float32)
    w2q = w2.astype(jnp.bfloat16).astype(jnp.float32)
    x = x_nchw.reshape(x_nchw.shape[0], -1).astype(jnp.float32)

    def bn(h, g, be):
        mu = jnp.mean(h, axis=0, keepdims=True)
        var = jnp.mean((h - mu) ** 2, axis=0, keepdims=True)
        return (h - mu) * jax.lax.rsqrt(var + BN_EPS) * g + be

    h = jnp.maximum(bn(x @ w1q + b1, g1, be1), 0.0)
    h = jnp.maximum(bn(h @ w2q + b2, g2, be2), 0.0)
    logits = h @ w3 + b3
    return jax.nn.log_softmax(logits, axis=1)


if __name__ == "__main__":
    # Small shapes consistent with the module's flatten-then-MLP structure:
    # batch=8 (>1 so training-mode BatchNorm is well-defined), C=4, H=W=8
    # -> input_dim = 256, hidden_dim = 256.
    B, C, H, W = 8, 4, 8, 8
    input_dim = C * H * W
    hidden_dim = 256

    key = jax.random.PRNGKey(0)
    kx, kp = jax.random.split(key)
    x = jax.random.normal(kx, (B, C, H, W), jnp.float32)
    params = init_params(kp, input_dim, hidden_dim)
    packed = pack_params(params, input_dim, hidden_dim)

    out = jax.block_until_ready(discriminator_forward(x, packed))
    ref = jax.block_until_ready(reference_forward(x, params))

    assert out.shape == (B, 2), out.shape
    max_err = float(jnp.max(jnp.abs(out - ref)))
    assert jnp.allclose(out, ref, atol=5e-4, rtol=5e-4), f"mismatch vs reference: {max_err}"

    print("KERNEL_OK")
</pallas_src>

<mosaic_0001>
module attributes {stable_mosaic.version = 11 : i64} {
  func.func @discriminator_kernel(%arg0: memref<8x256xf32, #tpu.memory_space<vmem>>, %arg1: memref<256x256xbf16, #tpu.memory_space<vmem>>, %arg2: memref<256x128xbf16, #tpu.memory_space<vmem>>, %arg3: memref<128x128xf32, #tpu.memory_space<vmem>>, %arg4: memref<8x256xf32, #tpu.memory_space<vmem>>, %arg5: memref<8x128xf32, #tpu.memory_space<vmem>>) attributes {dimension_semantics = [], scalar_prefetch = 0 : i64, scratch_operands = 0 : i64, tpu.core_type = #tpu.core_type<tc>} {
    %c0 = arith.constant 0 : index
    %c0_0 = arith.constant 0 : index
    %0 = vector.load %arg0[%c0, %c0_0] : memref<8x256xf32, #tpu.memory_space<vmem>>, vector<8x256xf32>
    %c0_1 = arith.constant 0 : index
    %c0_2 = arith.constant 0 : index
    %1 = vector.load %arg1[%c0_1, %c0_2] : memref<256x256xbf16, #tpu.memory_space<vmem>>, vector<256x256xbf16>
    %2 = arith.extf %1 : vector<256x256xbf16> to vector<256x256xf32>
    %cst = arith.constant dense<0.000000e+00> : vector<8x256xf32>
    %3 = tpu.matmul %0, %2, %cst {dimension_numbers = #tpu.dot_dimension_numbers<[1], [0], [0], [1], [0, 0, 1, 1], [], []>} : vector<8x256xf32>, vector<256x256xf32>, vector<8x256xf32> -> vector<8x256xf32>
    %c0_3 = arith.constant 0 : index
    %c0_4 = arith.constant 0 : index
    %4 = vector.load %arg4[%c0_3, %c0_4] : memref<8x256xf32, #tpu.memory_space<vmem>>, vector<1x256xf32>
    %c1 = arith.constant 1 : index
    %c0_5 = arith.constant 0 : index
    %5 = vector.load %arg4[%c1, %c0_5] : memref<8x256xf32, #tpu.memory_space<vmem>>, vector<1x256xf32>
    %cst_6 = arith.constant dense<0.000000e+00> : vector<256xf32>
    %6 = vector.multi_reduction <add>, %3, %cst_6 [0] : vector<8x256xf32> to vector<256xf32>
    %7 = vector.shape_cast %6 : vector<256xf32> to vector<1x256xf32>
    %cst_7 = arith.constant 8.000000e+00 : f32
    %8 = vector.broadcast %cst_7 : f32 to vector<1x256xf32>
    %9 = arith.divf %7, %8 : vector<1x256xf32>
    %10 = arith.mulf %3, %3 : vector<8x256xf32>
    %cst_8 = arith.constant dense<0.000000e+00> : vector<256xf32>
    %11 = vector.multi_reduction <add>, %10, %cst_8 [0] : vector<8x256xf32> to vector<256xf32>
    %12 = vector.shape_cast %11 : vector<256xf32> to vector<1x256xf32>
    %cst_9 = arith.constant 8.000000e+00 : f32
    %13 = vector.broadcast %cst_9 : f32 to vector<1x256xf32>
    %14 = arith.divf %12, %13 : vector<1x256xf32>
    %15 = arith.mulf %9, %9 : vector<1x256xf32>
    %16 = arith.subf %14, %15 : vector<1x256xf32>
    %cst_10 = arith.constant 0.000000e+00 : f32
    %17 = vector.broadcast %cst_10 : f32 to vector<1x256xf32>
    %18 = arith.maximumf %16, %17 : vector<1x256xf32>
    %cst_11 = arith.constant 9.99999974E-6 : f32
    %19 = vector.broadcast %cst_11 : f32 to vector<1x256xf32>
    %20 = arith.addf %18, %19 : vector<1x256xf32>
    %21 = math.rsqrt %20 : vector<1x256xf32>
    %22 = arith.mulf %4, %21 : vector<1x256xf32>
    %23 = arith.mulf %9, %22 : vector<1x256xf32>
    %24 = arith.subf %5, %23 : vector<1x256xf32>
    %25 = vector.broadcast %22 : vector<1x256xf32> to vector<8x256xf32>
    %26 = arith.mulf %3, %25 : vector<8x256xf32>
    %27 = vector.broadcast %24 : vector<1x256xf32> to vector<8x256xf32>
    %28 = arith.addf %26, %27 : vector<8x256xf32>
    %cst_12 = arith.constant 0.000000e+00 : f32
    %29 = vector.broadcast %cst_12 : f32 to vector<8x256xf32>
    %30 = arith.maximumf %28, %29 : vector<8x256xf32>
    %c0_13 = arith.constant 0 : index
    %c0_14 = arith.constant 0 : index
    %31 = vector.load %arg2[%c0_13, %c0_14] : memref<256x128xbf16, #tpu.memory_space<vmem>>, vector<256x128xbf16>
    %32 = arith.extf %31 : vector<256x128xbf16> to vector<256x128xf32>
    %cst_15 = arith.constant dense<0.000000e+00> : vector<8x128xf32>
    %33 = tpu.matmul %30, %32, %cst_15 {dimension_numbers = #tpu.dot_dimension_numbers<[1], [0], [0], [1], [0, 0, 1, 1], [], []>} : vector<8x256xf32>, vector<256x128xf32>, vector<8x128xf32> -> vector<8x128xf32>
    %c2 = arith.constant 2 : index
    %c0_16 = arith.constant 0 : index
    %34 = vector.load %arg4[%c2, %c0_16] : memref<8x256xf32, #tpu.memory_space<vmem>>, vector<1x128xf32>
    %c3 = arith.constant 3 : index
    %c0_17 = arith.constant 0 : index
    %35 = vector.load %arg4[%c3, %c0_17] : memref<8x256xf32, #tpu.memory_space<vmem>>, vector<1x128xf32>
    %cst_18 = arith.constant dense<0.000000e+00> : vector<128xf32>
    %36 = vector.multi_reduction <add>, %33, %cst_18 [0] : vector<8x128xf32> to vector<128xf32>
    %37 = vector.shape_cast %36 : vector<128xf32> to vector<1x128xf32>
    %cst_19 = arith.constant 8.000000e+00 : f32
    %38 = vector.broadcast %cst_19 : f32 to vector<1x128xf32>
    %39 = arith.divf %37, %38 : vector<1x128xf32>
    %40 = arith.mulf %33, %33 : vector<8x128xf32>
    %cst_20 = arith.constant dense<0.000000e+00> : vector<128xf32>
    %41 = vector.multi_reduction <add>, %40, %cst_20 [0] : vector<8x128xf32> to vector<128xf32>
    %42 = vector.shape_cast %41 : vector<128xf32> to vector<1x128xf32>
    %cst_21 = arith.constant 8.000000e+00 : f32
    %43 = vector.broadcast %cst_21 : f32 to vector<1x128xf32>
    %44 = arith.divf %42, %43 : vector<1x128xf32>
    %45 = arith.mulf %39, %39 : vector<1x128xf32>
    %46 = arith.subf %44, %45 : vector<1x128xf32>
    %cst_22 = arith.constant 0.000000e+00 : f32
    %47 = vector.broadcast %cst_22 : f32 to vector<1x128xf32>
    %48 = arith.maximumf %46, %47 : vector<1x128xf32>
    %cst_23 = arith.constant 9.99999974E-6 : f32
    %49 = vector.broadcast %cst_23 : f32 to vector<1x128xf32>
    %50 = arith.addf %48, %49 : vector<1x128xf32>
    %51 = math.rsqrt %50 : vector<1x128xf32>
    %52 = arith.mulf %34, %51 : vector<1x128xf32>
    %53 = arith.mulf %39, %52 : vector<1x128xf32>
    %54 = arith.subf %35, %53 : vector<1x128xf32>
    %55 = vector.broadcast %52 : vector<1x128xf32> to vector<8x128xf32>
    %56 = arith.mulf %33, %55 : vector<8x128xf32>
    %57 = vector.broadcast %54 : vector<1x128xf32> to vector<8x128xf32>
    %58 = arith.addf %56, %57 : vector<8x128xf32>
    %cst_24 = arith.constant 0.000000e+00 : f32
    %59 = vector.broadcast %cst_24 : f32 to vector<8x128xf32>
    %60 = arith.maximumf %58, %59 : vector<8x128xf32>
    %c0_25 = arith.constant 0 : index
    %c0_26 = arith.constant 0 : index
    %61 = vector.load %arg3[%c0_25, %c0_26] : memref<128x128xf32, #tpu.memory_space<vmem>>, vector<128x128xf32>
    %cst_27 = arith.constant dense<0.000000e+00> : vector<8x128xf32>
    %62 = tpu.matmul %60, %61, %cst_27 {dimension_numbers = #tpu.dot_dimension_numbers<[1], [0], [0], [1], [0, 0, 1, 1], [], []>} : vector<8x128xf32>, vector<128x128xf32>, vector<8x128xf32> -> vector<8x128xf32>
    %c4 = arith.constant 4 : index
    %c0_28 = arith.constant 0 : index
    %63 = vector.load %arg4[%c4, %c0_28] : memref<8x256xf32, #tpu.memory_space<vmem>>, vector<1x128xf32>
    %64 = vector.broadcast %63 : vector<1x128xf32> to vector<8x128xf32>
    %65 = arith.addf %62, %64 : vector<8x128xf32>
    %cst_29 = arith.constant dense<0xFF800000> : vector<8xf32>
    %66 = vector.multi_reduction <maximumf>, %65, %cst_29 [1] : vector<8x128xf32> to vector<8xf32>
    %67 = vector.shape_cast %66 : vector<8xf32> to vector<8x1xf32>
    %68 = vector.broadcast %67 : vector<8x1xf32> to vector<8x128xf32>
    %69 = arith.subf %65, %68 : vector<8x128xf32>
    %70 = math.exp %69 : vector<8x128xf32>
    %cst_30 = arith.constant dense<0.000000e+00> : vector<8xf32>
    %71 = vector.multi_reduction <add>, %70, %cst_30 [1] : vector<8x128xf32> to vector<8xf32>
    %72 = vector.shape_cast %71 : vector<8xf32> to vector<8x1xf32>
    %73 = math.log %72 : vector<8x1xf32>
    %74 = arith.addf %67, %73 : vector<8x1xf32>
    %75 = vector.broadcast %74 : vector<8x1xf32> to vector<8x128xf32>
    %76 = arith.subf %65, %75 : vector<8x128xf32>
    %c0_31 = arith.constant 0 : index
    %c0_32 = arith.constant 0 : index
    %77 = vector.load %arg5[%c0_31, %c0_32] : memref<8x128xf32, #tpu.memory_space<vmem>>, vector<8x128xf32>
    tpu.vector_store %arg5[%c0_31, %c0_32], %76 {strides = array<i32>} : memref<8x128xf32, #tpu.memory_space<vmem>>, vector<8x128xf32>,
    return
  }
}

</mosaic_0001>

<llo_original>
// kernel: tpu_custom_call.1
$region0: #{tpu_custom_call.1}
  #allocation0 [shape = 'u32[]', space=smem, size = 0x4, offset = 0x4, fixed_abs, tag = 'smem constant byte address 0x4 - core index']
  #allocation1 [shape = 'u32[72,128]{1,0:T(1,128)}', space=vmem, size = 0x9000, scoped, tag = 'internal scratch']
  %s0 = inlined_call_operand.hbm [shape: f32[8,256], index: 0, kind: input, shape index: {}]
  %s1 = inlined_call_operand.hbm [shape: bf16[256,256], index: 1, kind: input, shape index: {}]
  %s2 = inlined_call_operand.hbm [shape: bf16[256,128], index: 2, kind: input, shape index: {}]
  %s3 = inlined_call_operand.hbm [shape: f32[128,128], index: 3, kind: input, shape index: {}]
  %s4 = inlined_call_operand.hbm [shape: f32[8,256], index: 4, kind: input, shape index: {}]
  %s5 = inlined_call_operand.hbm [shape: f32[8,128], index: 5, kind: output, shape index: {}]
  %s6 = sld [smem:[#allocation0]]
  $region50: #{tpu_custom_call.1} parent=0
    _
  %s8 = ssub.s32 1, %s6
  %s9 = scalar_select 0, %s8, %s6
  $region1: #{tpu_custom_call.1} parent=0
    #allocation2 [shape = 'u8[8192]{0}', space=vmem, size = 0x2000, scoped, tag = 'input window, operand 0, single buffered']
    #allocation3 [shape = 's32[1]{0}', space=sflag, size = 0x4, scoped, tag = 'scoped memory for tpu_custom_call.1']
    #allocation4 [shape = 's32[1]{0}', space=sflag, size = 0x4, scoped, tag = 'scoped memory for tpu_custom_call.1']
    #allocation5 [shape = 'u8[131072]{0}', space=vmem, size = 0x20000, scoped, tag = 'input window, operand 1, single buffered']
    #allocation6 [shape = 's32[1]{0}', space=sflag, size = 0x4, scoped, tag = 'scoped memory for tpu_custom_call.1']
    #allocation7 [shape = 'u8[65536]{0}', space=vmem, size = 0x10000, scoped, tag = 'input window, operand 2, single buffered']
    #allocation8 [shape = 'u8[65536]{0}', space=vmem, size = 0x10000, scoped, tag = 'input window, operand 3, single buffered']
    #allocation9 [shape = 's32[1]{0}', space=sflag, size = 0x4, scoped, tag = 'scoped memory for tpu_custom_call.1']
    #allocation10 [shape = 'u8[8192]{0}', space=vmem, size = 0x2000, scoped, tag = 'input window, operand 4, single buffered']
    #allocation11 [shape = 'u8[4096]{0}', space=vmem, size = 0x1000, scoped, tag = 'output window, operand 0, single buffered']
    %10 = vsyncpa [#allocation3], 0
    %11 = vsyncpa [#allocation6], 0
    %12 = vsyncpa [#allocation9], 0
    %13 = vsyncpa [#allocation4], 0
    // Predicated region
    $region2: #{tpu_custom_call.1} parent=1 // pred_check
      _
    $region3: #{tpu_custom_call.1} parent=1 // pred_check_branch
      %15 = sbr.rel (0) target = $region5
    $region4: #{tpu_custom_call.1} parent=1 // pred_region
      %17 = vsyncadd [#allocation3], 0
      %s19 = sshll.u32 %s0, 4
      %s20 = int_to_ptr.hbm [resolvable:$true] %s19
      %s21 = sshll.u32 [#allocation2], 4
      %s22 = int_to_ptr.vmem [resolvable:$true] %s21
      %24 = dma.hbm_to_vmem [thread:$0]  %s20, 256, %s22, [#allocation3]
    $region5: #{tpu_custom_call.1} parent=1 // pred_fallthru
      _
    // Predicated region
    $region6: #{tpu_custom_call.1} parent=1 // pred_check
      _
    $region7: #{tpu_custom_call.1} parent=1 // pred_check_branch
      %26 = sbr.rel (0) target = $region9
    $region8: #{tpu_custom_call.1} parent=1 // pred_region
      %28 = vsyncadd [#allocation6], 0
      %s29 = sshll.u32 %s1, 4
      %s30 = int_to_ptr.hbm [resolvable:$true] %s29
      %s31 = sshll.u32 [#allocation5], 4
      %s32 = int_to_ptr.vmem [resolvable:$true] %s31
      %37 = dma.hbm_to_vmem [thread:$0]  %s30, 4096, %s32, [#allocation6], 128, 128, 8
    $region9: #{tpu_custom_call.1} parent=1 // pred_fallthru
      _
    // Predicated region
    $region10: #{tpu_custom_call.1} parent=1 // pred_check
      _
    $region11: #{tpu_custom_call.1} parent=1 // pred_check_branch
      %39 = sbr.rel (0) target = $region13
    $region12: #{tpu_custom_call.1} parent=1 // pred_region
      %41 = vsyncadd [#allocation6], 0
      %s42 = sshll.u32 %s2, 4
      %s43 = int_to_ptr.hbm [resolvable:$true] %s42
      %s44 = sshll.u32 [#allocation7], 4
      %s45 = int_to_ptr.vmem [resolvable:$true] %s44
      %50 = dma.hbm_to_vmem [thread:$0]  %s43, 2048, %s45, [#allocation6], 64, 64, 4
    $region13: #{tpu_custom_call.1} parent=1 // pred_fallthru
      _
    // Predicated region
    $region14: #{tpu_custom_call.1} parent=1 // pred_check
      _
    $region15: #{tpu_custom_call.1} parent=1 // pred_check_branch
      %52 = sbr.rel (0) target = $region17
    $region16: #{tpu_custom_call.1} parent=1 // pred_region
      %54 = vsyncadd [#allocation9], 0
      %s55 = sshll.u32 %s3, 4
      %s56 = int_to_ptr.hbm [resolvable:$true] %s55
      %s57 = sshll.u32 [#allocation8], 4
      %s58 = int_to_ptr.vmem [resolvable:$true] %s57
      %63 = dma.hbm_to_vmem [thread:$0]  %s56, 2048, %s58, [#allocation9], 128, 128, 8
    $region17: #{tpu_custom_call.1} parent=1 // pred_fallthru
      _
    // Predicated region
    $region18: #{tpu_custom_call.1} parent=1 // pred_check
      _
    $region19: #{tpu_custom_call.1} parent=1 // pred_check_branch
      %65 = sbr.rel (0) target = $region21
    $region20: #{tpu_custom_call.1} parent=1 // pred_region
      %67 = vsyncadd [#allocation9], 0
      %s69 = sshll.u32 %s4, 4
      %s70 = int_to_ptr.hbm [resolvable:$true] %s69
      %s71 = sshll.u32 [#allocation10], 4
      %s72 = int_to_ptr.vmem [resolvable:$true] %s71
      %74 = dma.hbm_to_vmem [thread:$0]  %s70, 256, %s72, [#allocation9]
    $region21: #{tpu_custom_call.1} parent=1 // pred_fallthru
      _
    // Predicated region
    $region22: #{tpu_custom_call.1} parent=1 // pred_check
      _
    $region23: #{tpu_custom_call.1} parent=1 // pred_check_branch
      %76 = sbr.rel (0) target = $region25
    $region24: #{tpu_custom_call.1} parent=1 // pred_region
      %78 = dma.done [#allocation3], 256
    $region25: #{tpu_custom_call.1} parent=1 // pred_fallthru
      _
    // Predicated region
    $region26: #{tpu_custom_call.1} parent=1 // pred_check
      _
    $region27: #{tpu_custom_call.1} parent=1 // pred_check_branch
      %80 = sbr.rel (0) target = $region29
    $region28: #{tpu_custom_call.1} parent=1 // pred_region
      %82 = dma.done [#allocation6], 4096
    $region29: #{tpu_custom_call.1} parent=1 // pred_fallthru
      _
    // Predicated region
    $region30: #{tpu_custom_call.1} parent=1 // pred_check
      _
    $region31: #{tpu_custom_call.1} parent=1 // pred_check_branch
      %84 = sbr.rel (0) target = $region33
    $region32: #{tpu_custom_call.1} parent=1 // pred_region
      %86 = dma.done [#allocation6], 2048
    $region33: #{tpu_custom_call.1} parent=1 // pred_fallthru
      _
    // Predicated region
    $region34: #{tpu_custom_call.1} parent=1 // pred_check
      _
    $region35: #{tpu_custom_call.1} parent=1 // pred_check_branch
      %88 = sbr.rel (0) target = $region37
    $region36: #{tpu_custom_call.1} parent=1 // pred_region
      %90 = dma.done [#allocation9], 2048
    $region37: #{tpu_custom_call.1} parent=1 // pred_fallthru
      _
    // Predicated region
    $region38: #{tpu_custom_call.1} parent=1 // pred_check
      _
    $region39: #{tpu_custom_call.1} parent=1 // pred_check_branch
      %92 = sbr.rel (0) target = $region41
    $region40: #{tpu_custom_call.1} parent=1 // pred_region
      %94 = dma.done [#allocation9], 256
    $region41: #{tpu_custom_call.1} parent=1 // pred_fallthru
      _
    %v95 = vld [vmem:[#allocation2] sm:$0xff]
    %v96 = vld [vmem:[#allocation2 + $0x8] sm:$0xff]
    %v97 = vld [vmem:[#allocation5] sm:$0xff]
    %v98 = vld [vmem:[#allocation5 + $0x8] sm:$0xff]
    %v99 = vld [vmem:[#allocation5 + $0x10] sm:$0xff]
    %v100 = vld [vmem:[#allocation5 + $0x18] sm:$0xff]
    %v101 = vld [vmem:[#allocation5 + $0x20] sm:$0xff]
    %v102 = vld [vmem:[#allocation5 + $0x28] sm:$0xff]
    %v103 = vld [vmem:[#allocation5 + $0x30] sm:$0xff]
    %v104 = vld [vmem:[#allocation5 + $0x38] sm:$0xff]
    %v105 = vld [vmem:[#allocation5 + $0x40] sm:$0xff]
    %v106 = vld [vmem:[#allocation5 + $0x48] sm:$0xff]
    %v107 = vld [vmem:[#allocation5 + $0x50] sm:$0xff]
    %v108 = vld [vmem:[#allocation5 + $0x58] sm:$0xff]
    %v109 = vld [vmem:[#allocation5 + $0x60] sm:$0xff]
    %v110 = vld [vmem:[#allocation5 + $0x68] sm:$0xff]
    %v111 = vld [vmem:[#allocation5 + $0x70] sm:$0xff]
    %v112 = vld [vmem:[#allocation5 + $0x78] sm:$0xff]
    %v113 = vld [vmem:[#allocation5 + $0x80] sm:$0xff]
    %v114 = vld [vmem:[#allocation5 + $0x88] sm:$0xff]
    %v115 = vld [vmem:[#allocation5 + $0x90] sm:$0xff]
    %v116 = vld [vmem:[#allocation5 + $0x98] sm:$0xff]
    %v117 = vld [vmem:[#allocation5 + $0xa0] sm:$0xff]
    %v118 = vld [vmem:[#allocation5 + $0xa8] sm:$0xff]
    %v119 = vld [vmem:[#allocation5 + $0xb0] sm:$0xff]
    %v120 = vld [vmem:[#allocation5 + $0xb8] sm:$0xff]
    %v121 = vld [vmem:[#allocation5 + $0xc0] sm:$0xff]
    %v122 = vld [vmem:[#allocation5 + $0xc8] sm:$0xff]
    %v123 = vld [vmem:[#allocation5 + $0xd0] sm:$0xff]
    %v124 = vld [vmem:[#allocation5 + $0xd8] sm:$0xff]
    %v125 = vld [vmem:[#allocation5 + $0xe0] sm:$0xff]
    %v126 = vld [vmem:[#allocation5 + $0xe8] sm:$0xff]
    %v127 = vld [vmem:[#allocation5 + $0xf0] sm:$0xff]
    %v128 = vld [vmem:[#allocation5 + $0xf8] sm:$0xff]
    %v129 = vunpack.c.l.bf16 %v97
    %v130 = vunpack.c.h.bf16 %v97
    %v131 = vunpack.c.l.bf16 %v98
    %v132 = vunpack.c.h.bf16 %v98
    %v133 = vunpack.c.l.bf16 %v99
    %v134 = vunpack.c.h.bf16 %v99
    %v135 = vunpack.c.l.bf16 %v100
    %v136 = vunpack.c.h.bf16 %v100
    %v137 = vunpack.c.l.bf16 %v101
    %v138 = vunpack.c.h.bf16 %v101
    %v139 = vunpack.c.l.bf16 %v102
    %v140 = vunpack.c.h.bf16 %v102
    %v141 = vunpack.c.l.bf16 %v103
    %v142 = vunpack.c.h.bf16 %v103
    %v143 = vunpack.c.l.bf16 %v104
    %v144 = vunpack.c.h.bf16 %v104
    %v145 = vunpack.c.l.bf16 %v105
    %v146 = vunpack.c.h.bf16 %v105
    %v147 = vunpack.c.l.bf16 %v106
    %v148 = vunpack.c.h.bf16 %v106
    %v149 = vunpack.c.l.bf16 %v107
    %v150 = vunpack.c.h.bf16 %v107
    %v151 = vunpack.c.l.bf16 %v108
    %v152 = vunpack.c.h.bf16 %v108
    %v153 = vunpack.c.l.bf16 %v109
    %v154 = vunpack.c.h.bf16 %v109
    %v155 = vunpack.c.l.bf16 %v110
    %v156 = vunpack.c.h.bf16 %v110
    %v157 = vunpack.c.l.bf16 %v111
    %v158 = vunpack.c.h.bf16 %v111
    %v159 = vunpack.c.l.bf16 %v112
    %v160 = vunpack.c.h.bf16 %v112
    %v161 = vunpack.c.l.bf16 %v113
    %v162 = vunpack.c.h.bf16 %v113
    %v163 = vunpack.c.l.bf16 %v114
    %v164 = vunpack.c.h.bf16 %v114
    %v165 = vunpack.c.l.bf16 %v115
    %v166 = vunpack.c.h.bf16 %v115
    %v167 = vunpack.c.l.bf16 %v116
    %v168 = vunpack.c.h.bf16 %v116
    %v169 = vunpack.c.l.bf16 %v117
    %v170 = vunpack.c.h.bf16 %v117
    %v171 = vunpack.c.l.bf16 %v118
    %v172 = vunpack.c.h.bf16 %v118
    %v173 = vunpack.c.l.bf16 %v119
    %v174 = vunpack.c.h.bf16 %v119
    %v175 = vunpack.c.l.bf16 %v120
    %v176 = vunpack.c.h.bf16 %v120
    %v177 = vunpack.c.l.bf16 %v121
    %v178 = vunpack.c.h.bf16 %v121
    %v179 = vunpack.c.l.bf16 %v122
    %v180 = vunpack.c.h.bf16 %v122
    %v181 = vunpack.c.l.bf16 %v123
    %v182 = vunpack.c.h.bf16 %v123
    %v183 = vunpack.c.l.bf16 %v124
    %v184 = vunpack.c.h.bf16 %v124
    %v185 = vunpack.c.l.bf16 %v125
    %v186 = vunpack.c.h.bf16 %v125
    %v187 = vunpack.c.l.bf16 %v126
    %v188 = vunpack.c.h.bf16 %v126
    %v189 = vunpack.c.l.bf16 %v127
    %v190 = vunpack.c.h.bf16 %v127
    %v191 = vunpack.c.l.bf16 %v128
    %v192 = vunpack.c.h.bf16 %v128
    %193 = vmatpush.msra.mxu0 %v159
    %194 = vmatpush.msra.mxu0 %v157
    %195 = vmatpush.msra.mxu0 %v155
    %196 = vmatpush.msra.mxu0 %v153
    %197 = vmatpush.msra.mxu0 %v151
    %198 = vmatpush.msra.mxu0 %v149
    %199 = vmatpush.msra.mxu0 %v147
    %200 = vmatpush.msra.mxu0 %v145
    %201 = vmatpush.msra.mxu0 %v143
    %202 = vmatpush.msra.mxu0 %v141
    %203 = vmatpush.msra.mxu0 %v139
    %204 = vmatpush.msra.mxu0 %v137
    %205 = vmatpush.msra.mxu0 %v135
    %206 = vmatpush.msra.mxu0 %v133
    %207 = vmatpush.msra.mxu0 %v131
    %208 = vmatpush.msra.mxu0 %v129
    %209 = vmatmul.f32.gmra.mxu0 %v95
    %v210 = vpop.f32.mrf.mxu0
    %v211 = vadd.f32 0.0, %v210
    %212 = vdwg.mxu0
    %213 = vmatpush.msra.mxu0 %v191
    %214 = vmatpush.msra.mxu0 %v189
    %215 = vmatpush.msra.mxu0 %v187
    %216 = vmatpush.msra.mxu0 %v185
    %217 = vmatpush.msra.mxu0 %v183
    %218 = vmatpush.msra.mxu0 %v181
    %219 = vmatpush.msra.mxu0 %v179
    %220 = vmatpush.msra.mxu0 %v177
    %221 = vmatpush.msra.mxu0 %v175
    %222 = vmatpush.msra.mxu0 %v173
    %223 = vmatpush.msra.mxu0 %v171
    %224 = vmatpush.msra.mxu0 %v169
    %225 = vmatpush.msra.mxu0 %v167
    %226 = vmatpush.msra.mxu0 %v165
    %227 = vmatpush.msra.mxu0 %v163
    %228 = vmatpush.msra.mxu0 %v161
    %229 = vmatmul.f32.gmra.mxu0 %v96
    %v230 = vpop.f32.mrf.mxu0
    %v231 = vadd.f32 %v211, %v230
    %232 = vdwg.mxu0
    %233 = vmatpush.msra.mxu0 %v160
    %234 = vmatpush.msra.mxu0 %v158
    %235 = vmatpush.msra.mxu0 %v156
    %236 = vmatpush.msra.mxu0 %v154
    %237 = vmatpush.msra.mxu0 %v152
    %238 = vmatpush.msra.mxu0 %v150
    %239 = vmatpush.msra.mxu0 %v148
    %240 = vmatpush.msra.mxu0 %v146
    %241 = vmatpush.msra.mxu0 %v144
    %242 = vmatpush.msra.mxu0 %v142
    %243 = vmatpush.msra.mxu0 %v140
    %244 = vmatpush.msra.mxu0 %v138
    %245 = vmatpush.msra.mxu0 %v136
    %246 = vmatpush.msra.mxu0 %v134
    %247 = vmatpush.msra.mxu0 %v132
    %248 = vmatpush.msra.mxu0 %v130
    %249 = vmatmul.f32.gmra.mxu0 %v95
    %v250 = vpop.f32.mrf.mxu0
    %v251 = vadd.f32 0.0, %v250
    %252 = vdwg.mxu0
    %253 = vmatpush.msra.mxu0 %v192
    %254 = vmatpush.msra.mxu0 %v190
    %255 = vmatpush.msra.mxu0 %v188
    %256 = vmatpush.msra.mxu0 %v186
    %257 = vmatpush.msra.mxu0 %v184
    %258 = vmatpush.msra.mxu0 %v182
    %259 = vmatpush.msra.mxu0 %v180
    %260 = vmatpush.msra.mxu0 %v178
    %261 = vmatpush.msra.mxu0 %v176
    %262 = vmatpush.msra.mxu0 %v174
    %263 = vmatpush.msra.mxu0 %v172
    %264 = vmatpush.msra.mxu0 %v170
    %265 = vmatpush.msra.mxu0 %v168
    %266 = vmatpush.msra.mxu0 %v166
    %267 = vmatpush.msra.mxu0 %v164
    %268 = vmatpush.msra.mxu0 %v162
    %269 = vmatmul.f32.gmra.mxu0 %v96
    %v270 = vpop.f32.mrf.mxu0
    %v271 = vadd.f32 %v251, %v270
    %272 = vdwg.mxu0
    %v273 = vld [vmem:[#allocation10] ss:$8 sm:$0x3]
    %s274 = scalar_lea.vmem [#allocation10], 1
    %v275 = vld [vmem:[%s274] ss:$8 sm:$0x3]
    %v276 = vrot.slane %v231, 4
    %v277 = vadd.f32 %v231, %v276
    %v278 = vrot.slane %v277, 2
    %v279 = vadd.f32 %v277, %v278
    %v280 = vrot.slane %v279, 1
    %v281 = vadd.f32 %v279, %v280
    %v282 = vrot.slane %v271, 4
    %v283 = vadd.f32 %v271, %v282
    %v284 = vrot.slane %v283, 2
    %v285 = vadd.f32 %v283, %v284
    %v286 = vrot.slane %v285, 1
    %v287 = vadd.f32 %v285, %v286
    %v288 = vrcp.pop 8.0
    %v289 = vmul.f32 8.0, %v288
    %v290 = vsub.f32 1.0, %v289
    %v291 = vmul.f32 %v288, %v290
    %v292 = vadd.f32 %v288, %v291
    %vm293 = vweird.f32 %v288
    %v294 = vsel %vm293, %v288, %v292
    %v295 = vmul.f32 %v281, %v294
    %v296 = vmul.f32 %v287, %v294
    %v297 = vmul.f32 %v231, %v231
    %v298 = vmul.f32 %v271, %v271
    %v299 = vrot.slane %v297, 4
    %v300 = vadd.f32 %v297, %v299
    %v301 = vrot.slane %v300, 2
    %v302 = vadd.f32 %v300, %v301
    %v303 = vrot.slane %v302, 1
    %v304 = vadd.f32 %v302, %v303
    %v305 = vrot.slane %v298, 4
    %v306 = vadd.f32 %v298, %v305
    %v307 = vrot.slane %v306, 2
    %v308 = vadd.f32 %v306, %v307
    %v309 = vrot.slane %v308, 1
    %v310 = vadd.f32 %v308, %v309
    %v311 = vmul.f32 %v304, %v294
    %v312 = vmul.f32 %v310, %v294
    %v313 = vmul.f32 %v295, %v295
    %v314 = vmul.f32 %v296, %v296
    %v315 = vsub.f32 %v311, %v313
    %v316 = vsub.f32 %v312, %v314
    %v317 = vmax.f32 %v315, 0.0
    %v318 = vmax.f32 %v316, 0.0
    %v319 = vadd.f32 %v317, 1e-05
    %v320 = vadd.f32 %v318, 1e-05
    %v321 = vrsqrt.pop %v319
    %v322 = vmul.f32 %v321, %v319
    %v323 = vmul.f32 %v322, %v321
    %v324 = vmul.f32 0.5, %v323
    %v325 = vsub.f32 1.5, %v324
    %v326 = vmul.f32 %v321, %v325
    %vm327 = vweird.f32 %v319
    %vm328 = vweird.f32 %v321
    %vm329 = vmor %vm327, %vm328
    %v330 = vsel %vm329, %v321, %v326
    %v331 = vrsqrt.pop %v320
    %v332 = vmul.f32 %v331, %v320
    %v333 = vmul.f32 %v332, %v331
    %v334 = vmul.f32 0.5, %v333
    %v335 = vsub.f32 1.5, %v334
    %v336 = vmul.f32 %v331, %v335
    %vm337 = vweird.f32 %v320
    %vm338 = vweird.f32 %v331
    %vm339 = vmor %vm337, %vm338
    %v340 = vsel %vm339, %v331, %v336
    %v343 = vrot.slane %v340, 7
    %vm344 = vcmask 1040384
    %v345 = vsel %vm344, %v330, %v343
    %v347 = vmul.f32 %v273, %v345
    %v349 = vperm.slane %v347, 0
    %v350 = vperm.slane %v347, 1
    %v353 = vmul.f32 %v295, %v349
    %v354 = vmul.f32 %v296, %v350
    %v357 = vrot.slane %v354, 7
    %v358 = vsel %vm344, %v353, %v357
    %v360 = vsub.f32 %v275, %v358
    %v361 = vmul.f32 %v231, %v349
    %v362 = vmul.f32 %v271, %v350
    %v364 = vperm.slane %v360, 0
    %v365 = vperm.slane %v360, 1
    %v368 = vadd.f32 %v361, %v364
    %v369 = vadd.f32 %v362, %v365
    %v370 = vmax.f32 %v368, 0.0
    %v371 = vmax.f32 %v369, 0.0
    %v372 = vld [vmem:[#allocation7] sm:$0xf]
    %v373 = vld [vmem:[#allocation7 + $0x4] sm:$0xf]
    %v374 = vld [vmem:[#allocation7 + $0x8] sm:$0xf]
    %v375 = vld [vmem:[#allocation7 + $0xc] sm:$0xf]
    %v376 = vld [vmem:[#allocation7 + $0x10] sm:$0xf]
    %v377 = vld [vmem:[#allocation7 + $0x14] sm:$0xf]
    %v378 = vld [vmem:[#allocation7 + $0x18] sm:$0xf]
    %v379 = vld [vmem:[#allocation7 + $0x1c] sm:$0xf]
    %v380 = vld [vmem:[#allocation7 + $0x20] sm:$0xf]
    %v381 = vld [vmem:[#allocation7 + $0x24] sm:$0xf]
    %v382 = vld [vmem:[#allocation7 + $0x28] sm:$0xf]
    %v383 = vld [vmem:[#allocation7 + $0x2c] sm:$0xf]
    %v384 = vld [vmem:[#allocation7 + $0x30] sm:$0xf]
    %v385 = vld [vmem:[#allocation7 + $0x34] sm:$0xf]
    %v386 = vld [vmem:[#allocation7 + $0x38] sm:$0xf]
    %v387 = vld [vmem:[#allocation7 + $0x3c] sm:$0xf]
    %v388 = vld [vmem:[#allocation7 + $0x40] sm:$0xf]
    %v389 = vld [vmem:[#allocation7 + $0x44] sm:$0xf]
    %v390 = vld [vmem:[#allocation7 + $0x48] sm:$0xf]
    %v391 = vld [vmem:[#allocation7 + $0x4c] sm:$0xf]
    %v392 = vld [vmem:[#allocation7 + $0x50] sm:$0xf]
    %v393 = vld [vmem:[#allocation7 + $0x54] sm:$0xf]
    %v394 = vld [vmem:[#allocation7 + $0x58] sm:$0xf]
    %v395 = vld [vmem:[#allocation7 + $0x5c] sm:$0xf]
    %v396 = vld [vmem:[#allocation7 + $0x60] sm:$0xf]
    %v397 = vld [vmem:[#allocation7 + $0x64] sm:$0xf]
    %v398 = vld [vmem:[#allocation7 + $0x68] sm:$0xf]
    %v399 = vld [vmem:[#allocation7 + $0x6c] sm:$0xf]
    %v400 = vld [vmem:[#allocation7 + $0x70] sm:$0xf]
    %v401 = vld [vmem:[#allocation7 + $0x74] sm:$0xf]
    %v402 = vld [vmem:[#allocation7 + $0x78] sm:$0xf]
    %v403 = vld [vmem:[#allocation7 + $0x7c] sm:$0xf]
    %v404 = vunpack.c.l.bf16 %v372
    %v405 = vunpack.c.l.bf16 %v373
    %v406 = vunpack.c.l.bf16 %v374
    %v407 = vunpack.c.l.bf16 %v375
    %v408 = vunpack.c.l.bf16 %v376
    %v409 = vunpack.c.l.bf16 %v377
    %v410 = vunpack.c.l.bf16 %v378
    %v411 = vunpack.c.l.bf16 %v379
    %v412 = vunpack.c.l.bf16 %v380
    %v413 = vunpack.c.l.bf16 %v381
    %v414 = vunpack.c.l.bf16 %v382
    %v415 = vunpack.c.l.bf16 %v383
    %v416 = vunpack.c.l.bf16 %v384
    %v417 = vunpack.c.l.bf16 %v385
    %v418 = vunpack.c.l.bf16 %v386
    %v419 = vunpack.c.l.bf16 %v387
    %v420 = vunpack.c.l.bf16 %v388
    %v421 = vunpack.c.l.bf16 %v389
    %v422 = vunpack.c.l.bf16 %v390
    %v423 = vunpack.c.l.bf16 %v391
    %v424 = vunpack.c.l.bf16 %v392
    %v425 = vunpack.c.l.bf16 %v393
    %v426 = vunpack.c.l.bf16 %v394
    %v427 = vunpack.c.l.bf16 %v395
    %v428 = vunpack.c.l.bf16 %v396
    %v429 = vunpack.c.l.bf16 %v397
    %v430 = vunpack.c.l.bf16 %v398
    %v431 = vunpack.c.l.bf16 %v399
    %v432 = vunpack.c.l.bf16 %v400
    %v433 = vunpack.c.l.bf16 %v401
    %v434 = vunpack.c.l.bf16 %v402
    %v435 = vunpack.c.l.bf16 %v403
    %436 = vmatpush.msra.mxu0 %v419
    %437 = vmatpush.msra.mxu0 %v418
    %438 = vmatpush.msra.mxu0 %v417
    %439 = vmatpush.msra.mxu0 %v416
    %440 = vmatpush.msra.mxu0 %v415
    %441 = vmatpush.msra.mxu0 %v414
    %442 = vmatpush.msra.mxu0 %v413
    %443 = vmatpush.msra.mxu0 %v412
    %444 = vmatpush.msra.mxu0 %v411
    %445 = vmatpush.msra.mxu0 %v410
    %446 = vmatpush.msra.mxu0 %v409
    %447 = vmatpush.msra.mxu0 %v408
    %448 = vmatpush.msra.mxu0 %v407
    %449 = vmatpush.msra.mxu0 %v406
    %450 = vmatpush.msra.mxu0 %v405
    %451 = vmatpush.msra.mxu0 %v404
    %452 = vmatmul.f32.gmra.mxu0 %v370
    %v453 = vpop.f32.mrf.mxu0
    %v454 = vadd.f32 0.0, %v453
    %455 = vdwg.mxu0
    %456 = vmatpush.msra.mxu0 %v435
    %457 = vmatpush.msra.mxu0 %v434
    %458 = vmatpush.msra.mxu0 %v433
    %459 = vmatpush.msra.mxu0 %v432
    %460 = vmatpush.msra.mxu0 %v431
    %461 = vmatpush.msra.mxu0 %v430
    %462 = vmatpush.msra.mxu0 %v429
    %463 = vmatpush.msra.mxu0 %v428
    %464 = vmatpush.msra.mxu0 %v427
    %465 = vmatpush.msra.mxu0 %v426
    %466 = vmatpush.msra.mxu0 %v425
    %467 = vmatpush.msra.mxu0 %v424
    %468 = vmatpush.msra.mxu0 %v423
    %469 = vmatpush.msra.mxu0 %v422
    %470 = vmatpush.msra.mxu0 %v421
    %471 = vmatpush.msra.mxu0 %v420
    %472 = vmatmul.f32.gmra.mxu0 %v371
    %v473 = vpop.f32.mrf.mxu0
    %v474 = vadd.f32 %v454, %v473
    %475 = vdwg.mxu0
    %v476 = vld [vmem:[#allocation10 + $0x2] ss:$0 sm:$0xff]
    %v477 = vld [vmem:[#allocation10 + $0x3] ss:$0 sm:$0xff]
    %v478 = vrot.slane %v474, 4
    %v479 = vadd.f32 %v474, %v478
    %v480 = vrot.slane %v479, 2
    %v481 = vadd.f32 %v479, %v480
    %v482 = vrot.slane %v481, 1
    %v483 = vadd.f32 %v481, %v482
    %v484 = vmul.f32 %v483, %v294
    %v485 = vmul.f32 %v474, %v474
    %v486 = vrot.slane %v485, 4
    %v487 = vadd.f32 %v485, %v486
    %v488 = vrot.slane %v487, 2
    %v489 = vadd.f32 %v487, %v488
    %v490 = vrot.slane %v489, 1
    %v491 = vadd.f32 %v489, %v490
    %v492 = vmul.f32 %v491, %v294
    %v493 = vmul.f32 %v484, %v484
    %v494 = vsub.f32 %v492, %v493
    %v495 = vmax.f32 %v494, 0.0
    %v496 = vadd.f32 %v495, 1e-05
    %v497 = vrsqrt.pop %v496
    %v498 = vmul.f32 %v497, %v496
    %v499 = vmul.f32 %v498, %v497
    %v500 = vmul.f32 0.5, %v499
    %v501 = vsub.f32 1.5, %v500
    %v502 = vmul.f32 %v497, %v501
    %vm503 = vweird.f32 %v496
    %vm504 = vweird.f32 %v497
    %vm505 = vmor %vm503, %vm504
    %v506 = vsel %vm505, %v497, %v502
    %v507 = vmul.f32 %v476, %v506
    %v508 = vmul.f32 %v484, %v507
    %v509 = vsub.f32 %v477, %v508
    %v510 = vmul.f32 %v474, %v507
    %v511 = vadd.f32 %v510, %v509
    %v512 = vmax.f32 %v511, 0.0
    %v513 = vld [vmem:[#allocation8] sm:$0xff]
    %v514 = vld [vmem:[#allocation8 + $0x8] sm:$0xff]
    %v515 = vld [vmem:[#allocation8 + $0x10] sm:$0xff]
    %v516 = vld [vmem:[#allocation8 + $0x18] sm:$0xff]
    %v517 = vld [vmem:[#allocation8 + $0x20] sm:$0xff]
    %v518 = vld [vmem:[#allocation8 + $0x28] sm:$0xff]
    %v519 = vld [vmem:[#allocation8 + $0x30] sm:$0xff]
    %v520 = vld [vmem:[#allocation8 + $0x38] sm:$0xff]
    %v521 = vld [vmem:[#allocation8 + $0x40] sm:$0xff]
    %v522 = vld [vmem:[#allocation8 + $0x48] sm:$0xff]
    %v523 = vld [vmem:[#allocation8 + $0x50] sm:$0xff]
    %v524 = vld [vmem:[#allocation8 + $0x58] sm:$0xff]
    %v525 = vld [vmem:[#allocation8 + $0x60] sm:$0xff]
    %v526 = vld [vmem:[#allocation8 + $0x68] sm:$0xff]
    %v527 = vld [vmem:[#allocation8 + $0x70] sm:$0xff]
    %v528 = vld [vmem:[#allocation8 + $0x78] sm:$0xff]
    %v529 = vld [vmem:[#allocation10 + $0x4] ss:$0 sm:$0xff]
    %530 = vmatpush.msra.mxu0 %v528
    %531 = vmatpush.msra.mxu0 %v527
    %532 = vmatpush.msra.mxu0 %v526
    %533 = vmatpush.msra.mxu0 %v525
    %534 = vmatpush.msra.mxu0 %v524
    %535 = vmatpush.msra.mxu0 %v523
    %536 = vmatpush.msra.mxu0 %v522
    %537 = vmatpush.msra.mxu0 %v521
    %538 = vmatpush.msra.mxu0 %v520
    %539 = vmatpush.msra.mxu0 %v519
    %540 = vmatpush.msra.mxu0 %v518
    %541 = vmatpush.msra.mxu0 %v517
    %542 = vmatpush.msra.mxu0 %v516
    %543 = vmatpush.msra.mxu0 %v515
    %544 = vmatpush.msra.mxu0 %v514
    %545 = vmatpush.msra.mxu0 %v513
    %546 = vmatmul.f32.gmra.mxu0 %v512
    %v547 = vpop.f32.mrf.mxu0
    %v548 = vadd.f32 %v529, %v547
    %549 = vdwg.mxu0
    %550 = vmax.xlane.f32.xlu0 %v548
    %v551 = vpop.xlane.xlu0 %550
    %v552 = vsub.f32 %v548, %v551
    %v553 = vmul.f32 %v552, 1.442695
    %v554 = vpow.pop %v553
    %555 = vadd.xlane.f32.xlu0 %v554
    %v556 = vpop.xlane.xlu0 %555
    %v557 = vlog2.pop %v556
    %v558 = vmul.f32 %v557, 0.6931472
    %v559 = vadd.f32 %v551, %v558
    %v560 = vsub.f32 %v548, %v559
    %561 = vst [vmem:[#allocation11] sm:$0xff] %v560
    // Predicated region
    $region42: #{tpu_custom_call.1} parent=1 // pred_check
      _
    $region43: #{tpu_custom_call.1} parent=1 // pred_check_branch
      %563 = sbr.rel (0) target = $region45
    $region44: #{tpu_custom_call.1} parent=1 // pred_region
      %565 = vsyncadd [#allocation4], 0
      %s567 = sshll.u32 [#allocation11], 4
      %s568 = int_to_ptr.vmem [resolvable:$true] %s567
      %s569 = sshll.u32 %s5, 4
      %s570 = int_to_ptr.hbm [resolvable:$true] %s569
      %572 = dma.vmem_to_hbm [thread:$0]  %s568, 128, %s570, [#allocation4]
    $region45: #{tpu_custom_call.1} parent=1 // pred_fallthru
      _
    // Predicated region
    $region46: #{tpu_custom_call.1} parent=1 // pred_check
      _
    $region47: #{tpu_custom_call.1} parent=1 // pred_check_branch
      %574 = sbr.rel (0) target = $region49
    $region48: #{tpu_custom_call.1} parent=1 // pred_region
      %576 = dma.done [#allocation4], 128
    $region49: #{tpu_custom_call.1} parent=1 // pred_fallthru
      _
    %577 = vsyncpa [#allocation3], 1
    %578 = vsyncpa [#allocation6], 1
    %579 = vsyncpa [#allocation9], 1
    %580 = vsyncpa [#allocation4], 1

</llo_original>
